<compile_context>
chip_gen: v7x
topology: tpu7x:2x2x1
jax: 0.10.0
libtpu: 0.0.40
codegen_flags: <defaults>
</compile_context>

<pallas_src>
import functools

import jax
import jax.numpy as jnp
from jax.experimental import pallas as pl
from jax.experimental.pallas import tpu as pltpu

ACT_DTYPE = jnp.bfloat16   # activations / weights in HBM; accumulation stays f32


# ------------------------------ in-kernel helpers ----------------------------


def _conv3x3_bn_relu(x, w, scale, bias, H, W, Cin):
    """'same' 3x3 conv as one im2col matmul + folded-BN affine + ReLU.

    x: (H, W, Cin) f32 value; w: (9*Cin, Cout) bf16; scale/bias: (1, Cout) f32.
    Returns (H*W, Cout) f32.
    """
    zc = jnp.zeros((H, 1, Cin), jnp.float32)
    xp = jnp.concatenate([zc, x, zc], axis=1)                  # (H, W+2, Cin)
    zr = jnp.zeros((1, W + 2, Cin), jnp.float32)
    xp = jnp.concatenate([zr, xp, zr], axis=0)                 # (H+2, W+2, Cin)
    cols = [xp[dh:dh + H, dw:dw + W, :].reshape(H * W, Cin)
            for dh in range(3) for dw in range(3)]
    patches = jnp.concatenate(cols, axis=-1).astype(w.dtype)   # (H*W, 9*Cin)
    acc = jnp.dot(patches, w, preferred_element_type=jnp.float32)
    return jnp.maximum(acc * scale + bias, 0.0)


# --------------------- ConvTranspose2d + BN + ReLU kernel ---------------------


def _convt_phase_kernel(x_ref, wee_ref, weo_ref, woe_ref, woo_ref, s_ref, b_ref,
                        o_ref, *, H, W, Cin, Cout):
    """ConvTranspose2d(3x3, s=2, p=1, op=1) + BN + ReLU, 4-phase decomposition.

    Output channels are phase-packed: o[n,u,v,(2r+s)*Cout+c] == y[n,2u+r,2v+s,c].
    """
    x = x_ref[0].astype(jnp.float32)                           # (H, W, Cin)
    zc = jnp.zeros((H, 1, Cin), jnp.float32)
    zr = jnp.zeros((1, W + 1, Cin), jnp.float32)
    xp = jnp.concatenate([jnp.concatenate([x, zc], axis=1), zr], axis=0)

    x00 = xp[0:H, 0:W, :].reshape(H * W, Cin)                  # x[u,   v  ]
    x01 = xp[0:H, 1:W + 1, :].reshape(H * W, Cin)              # x[u,   v+1]
    x10 = xp[1:H + 1, 0:W, :].reshape(H * W, Cin)              # x[u+1, v  ]
    x11 = xp[1:H + 1, 1:W + 1, :].reshape(H * W, Cin)          # x[u+1, v+1]

    scale, bias = s_ref[...], b_ref[...]
    wd = wee_ref.dtype

    def bn_relu(acc):
        return jnp.maximum(acc * scale + bias, 0.0)

    y_ee = bn_relu(jnp.dot(x00.astype(wd), wee_ref[...],
                           preferred_element_type=jnp.float32))
    y_eo = bn_relu(jnp.dot(jnp.concatenate([x01, x00], axis=-1).astype(wd),
                           weo_ref[...], preferred_element_type=jnp.float32))
    y_oe = bn_relu(jnp.dot(jnp.concatenate([x10, x00], axis=-1).astype(wd),
                           woe_ref[...], preferred_element_type=jnp.float32))
    y_oo = bn_relu(jnp.dot(jnp.concatenate([x11, x10, x01, x00], axis=-1).astype(wd),
                           woo_ref[...], preferred_element_type=jnp.float32))

    out = jnp.concatenate([y_ee, y_eo, y_oe, y_oo], axis=-1)   # (H*W, 4*Cout)
    o_ref[...] = out.reshape(1, H, W, 4 * Cout).astype(o_ref.dtype)


def convt_bn_relu(x, p):
    """NHWC (N, H, W, Cin) -> upsampled (N, 2H, 2W, Cout)."""
    N, H, W, Cin = x.shape
    Cout = p["wt_ee"].shape[-1]
    kernel = functools.partial(_convt_phase_kernel, H=H, W=W, Cin=Cin, Cout=Cout)
    vec_spec = pl.BlockSpec((1, Cout), lambda n: (0, 0))
    hp = pl.pallas_call(
        kernel,
        out_shape=jax.ShapeDtypeStruct((N, H, W, 4 * Cout), ACT_DTYPE),
        grid=(N,),
        in_specs=[
            pl.BlockSpec((1, H, W, Cin), lambda n: (n, 0, 0, 0)),
            pl.BlockSpec((Cin, Cout), lambda n: (0, 0)),
            pl.BlockSpec((2 * Cin, Cout), lambda n: (0, 0)),
            pl.BlockSpec((2 * Cin, Cout), lambda n: (0, 0)),
            pl.BlockSpec((4 * Cin, Cout), lambda n: (0, 0)),
            vec_spec, vec_spec,
        ],
        out_specs=pl.BlockSpec((1, H, W, 4 * Cout), lambda n: (n, 0, 0, 0)),
        compiler_params=pltpu.CompilerParams(dimension_semantics=("parallel",)),
    )(x, p["wt_ee"], p["wt_eo"], p["wt_oe"], p["wt_oo"], p["st"], p["bt"])
    # Interleave phases: (N,H,W,2,2,C) -> (N,H,2,W,2,C) -> (N,2H,2W,C).
    hp = hp.reshape(N, H, W, 2, 2, Cout)
    return jnp.transpose(hp, (0, 1, 3, 2, 4, 5)).reshape(N, 2 * H, 2 * W, Cout)


# ----------------------- fused ConvBlockRes kernel ----------------------------


def _conv_block_res_kernel(*args, H, W, C, first):
    if first:
        (x_ref, cat_ref, w1_ref, s1_ref, b1_ref,
         w2_ref, s2_ref, b2_ref, wsc_ref, bsc_ref, o_ref) = args
        cin = 2 * C
        xin = jnp.concatenate([x_ref[0].astype(jnp.float32),
                               cat_ref[0].astype(jnp.float32)], axis=-1)
    else:
        (x_ref, w1_ref, s1_ref, b1_ref,
         w2_ref, s2_ref, b2_ref, o_ref) = args
        cin = C
        xin = x_ref[0].astype(jnp.float32)

    h1 = _conv3x3_bn_relu(xin, w1_ref[...], s1_ref[...], b1_ref[...], H, W, cin)
    h1 = h1.reshape(H, W, C)
    h2 = _conv3x3_bn_relu(h1, w2_ref[...], s2_ref[...], b2_ref[...], H, W, C)

    if first:   # 1x1 conv shortcut: a plain matmul over the fused concat input
        sc = jnp.dot(xin.reshape(H * W, cin).astype(wsc_ref.dtype), wsc_ref[...],
                     preferred_element_type=jnp.float32) + bsc_ref[...]
    else:       # identity shortcut
        sc = xin.reshape(H * W, C)

    o_ref[...] = (h2 + sc).reshape(1, H, W, C).astype(o_ref.dtype)


def conv_block_res(x, bp, cat=None):
    """One fused pallas_call per ConvBlockRes.  If `cat` is given, the channel
    concat and the 1x1 shortcut conv (in_ch != out_ch case) are fused too."""
    N, H, W, C = x.shape
    first = cat is not None
    cin = 2 * C if first else C
    kernel = functools.partial(_conv_block_res_kernel, H=H, W=W, C=C, first=first)
    act_spec = pl.BlockSpec((1, H, W, C), lambda n: (n, 0, 0, 0))
    vec_spec = pl.BlockSpec((1, C), lambda n: (0, 0))

    in_specs = [act_spec]
    inputs = [x]
    if first:
        in_specs.append(act_spec)
        inputs.append(cat)
    in_specs += [
        pl.BlockSpec((9 * cin, C), lambda n: (0, 0)), vec_spec, vec_spec,
        pl.BlockSpec((9 * C, C), lambda n: (0, 0)), vec_spec, vec_spec,
    ]
    inputs += [bp["w1"], bp["s1"], bp["b1"], bp["w2"], bp["s2"], bp["b2"]]
    if first:
        in_specs += [pl.BlockSpec((cin, C), lambda n: (0, 0)), vec_spec]
        inputs += [bp["wsc"], bp["bsc"]]

    return pl.pallas_call(
        kernel,
        out_shape=jax.ShapeDtypeStruct((N, H, W, C), ACT_DTYPE),
        grid=(N,),
        in_specs=in_specs,
        out_specs=act_spec,
        compiler_params=pltpu.CompilerParams(dimension_semantics=("parallel",)),
    )(*inputs)


# ------------------------------- forward pass ---------------------------------


def res_decoder_block_forward(x_nchw, concat_nchw, params):
    """Matches ResDecoderBlock.forward (stride=(2,2)): NCHW in, NCHW out."""
    x = jnp.transpose(x_nchw, (0, 2, 3, 1)).astype(ACT_DTYPE)
    cat = jnp.transpose(concat_nchw, (0, 2, 3, 1)).astype(ACT_DTYPE)
    h = convt_bn_relu(x, params)                               # (N, 2H, 2W, Cout)
    h = conv_block_res(h, params["blocks"][0], cat=cat)        # fused concat block
    for bp in params["blocks"][1:]:
        h = conv_block_res(h, bp)
    return jnp.transpose(h.astype(jnp.float32), (0, 3, 1, 2))


# ---------------- parameter construction (deterministic, synthetic) -----------


def _folded_bn(c, tag):
    i = jnp.arange(c, dtype=jnp.float32)
    gamma = 1.0 + 0.02 * jnp.cos(i + tag)
    beta = 0.01 * jnp.sin(i * 0.7 + tag)
    mean = 0.02 * jnp.sin(i * 0.3 + tag)
    var = 1.0 + 0.05 * (jnp.cos(i * 0.5 + tag) ** 2)
    scale = gamma / jnp.sqrt(var + 1e-5)
    return scale, beta - mean * scale


def init_raw_params(key, in_channels, out_channels, n_blocks=1):
    """Synthetic weights in the PyTorch layouts (as a checkpoint would provide)."""
    raw = {}
    key, kt = jax.random.split(key)
    raw["wt"] = 0.1 * jax.random.normal(                       # ConvTranspose2d (Cin,Cout,kh,kw)
        kt, (in_channels, out_channels, 3, 3), jnp.float32)
    raw["st"], raw["bt"] = _folded_bn(out_channels, 0)
    tag = 1
    blocks, bch = [], 2 * out_channels
    for _ in range(n_blocks):
        key, k1, k2, k3 = jax.random.split(key, 4)
        blk = {
            "w1": 0.1 * jax.random.normal(k1, (out_channels, bch, 3, 3), jnp.float32),
            "w2": 0.1 * jax.random.normal(k2, (out_channels, out_channels, 3, 3), jnp.float32),
        }
        blk["s1"], blk["b1"] = _folded_bn(out_channels, tag); tag += 1
        blk["s2"], blk["b2"] = _folded_bn(out_channels, tag); tag += 1
        if bch != out_channels:
            blk["wsc"] = 0.1 * jax.random.normal(k3, (out_channels, bch, 1, 1), jnp.float32)
            blk["bsc"] = 0.01 * jnp.arange(out_channels, dtype=jnp.float32)
        blocks.append(blk)
        bch = out_channels
    raw["blocks"] = blocks
    return raw


def pack_params(raw):
    """Prepack weights into kernel-ready layouts (done once, not per forward)."""
    wt = raw["wt"]
    tap = lambda kh, kw: wt[:, :, kh, kw]                      # (Cin, Cout)
    p = {
        # 4-phase ConvTranspose taps; row order matches the kernel's K-concat order.
        "wt_ee": tap(1, 1).astype(ACT_DTYPE),
        "wt_eo": jnp.concatenate([tap(1, 0), tap(1, 2)], axis=0).astype(ACT_DTYPE),
        "wt_oe": jnp.concatenate([tap(0, 1), tap(2, 1)], axis=0).astype(ACT_DTYPE),
        "wt_oo": jnp.concatenate([tap(0, 0), tap(0, 2), tap(2, 0), tap(2, 2)],
                                 axis=0).astype(ACT_DTYPE),
        "st": raw["st"][None, :], "bt": raw["bt"][None, :],
        "blocks": [],
    }
    for blk in raw["blocks"]:
        cout, bch = blk["w1"].shape[0], blk["w1"].shape[1]
        bp = {
            "w1": jnp.transpose(blk["w1"], (2, 3, 1, 0)).reshape(9 * bch, cout).astype(ACT_DTYPE),
            "w2": jnp.transpose(blk["w2"], (2, 3, 1, 0)).reshape(9 * cout, cout).astype(ACT_DTYPE),
            "s1": blk["s1"][None, :], "b1": blk["b1"][None, :],
            "s2": blk["s2"][None, :], "b2": blk["b2"][None, :],
        }
        if "wsc" in blk:
            bp["wsc"] = blk["wsc"][:, :, 0, 0].T.astype(ACT_DTYPE)     # (Cin, Cout)
            bp["bsc"] = blk["bsc"][None, :]
        p["blocks"].append(bp)
    return p


# ----------------------- pure-JAX reference (f32, NCHW) -----------------------


def _ref_bn(x, s, b):
    return x * s.reshape(1, -1, 1, 1) + b.reshape(1, -1, 1, 1)


def reference_forward(x, cat, raw):
    # ConvTranspose2d(3,3,s=2,p=1,op=1) == dilate-by-2 + pad(1,2) + conv with the
    # spatially flipped, channel-swapped kernel.
    w_t = jnp.transpose(raw["wt"][:, :, ::-1, ::-1], (1, 0, 2, 3))       # OIHW
    h = jax.lax.conv_general_dilated(
        x, w_t, window_strides=(1, 1), padding=((1, 2), (1, 2)),
        lhs_dilation=(2, 2), dimension_numbers=("NCHW", "OIHW", "NCHW"))
    h = jnp.maximum(_ref_bn(h, raw["st"], raw["bt"]), 0.0)
    h = jnp.concatenate([h, cat], axis=1)
    for blk in raw["blocks"]:
        y = jax.lax.conv_general_dilated(h, blk["w1"], (1, 1), ((1, 1), (1, 1)),
                                         dimension_numbers=("NCHW", "OIHW", "NCHW"))
        y = jnp.maximum(_ref_bn(y, blk["s1"], blk["b1"]), 0.0)
        y = jax.lax.conv_general_dilated(y, blk["w2"], (1, 1), ((1, 1), (1, 1)),
                                         dimension_numbers=("NCHW", "OIHW", "NCHW"))
        y = jnp.maximum(_ref_bn(y, blk["s2"], blk["b2"]), 0.0)
        if "wsc" in blk:
            sc = jax.lax.conv_general_dilated(h, blk["wsc"], (1, 1), ((0, 0), (0, 0)),
                                              dimension_numbers=("NCHW", "OIHW", "NCHW"))
            sc = sc + blk["bsc"].reshape(1, -1, 1, 1)
        else:
            sc = h
        h = y + sc
    return h


if __name__ == "__main__":
    key = jax.random.PRNGKey(0)
    N, in_channels, out_channels = 2, 16, 8
    H, W = 8, 8
    n_blocks = 2     # exercises both the concat/shortcut block and the identity block

    k_x, k_c, k_p = jax.random.split(key, 3)
    x = jax.random.normal(k_x, (N, in_channels, H, W), jnp.float32)
    concat_tensor = jax.random.normal(k_c, (N, out_channels, 2 * H, 2 * W), jnp.float32)

    raw = init_raw_params(k_p, in_channels, out_channels, n_blocks=n_blocks)
    params = pack_params(raw)

    out = res_decoder_block_forward(x, concat_tensor, params)
    out = jax.block_until_ready(out)
    assert out.shape == (N, out_channels, 2 * H, 2 * W), out.shape

    ref = jax.block_until_ready(reference_forward(x, concat_tensor, raw))
    err = float(jnp.max(jnp.abs(out - ref)))
    assert err < 1e-1, f"max abs error vs reference: {err}"
    print("KERNEL_OK")
</pallas_src>

<mosaic_0001>
module attributes {stable_mosaic.version = 11 : i64} {
  func.func @_convt_phase_kernel(%arg0: i32, %arg1: memref<1x8x8x16xbf16, #tpu.memory_space<vmem>>, %arg2: memref<16x8xbf16, #tpu.memory_space<vmem>>, %arg3: memref<32x8xbf16, #tpu.memory_space<vmem>>, %arg4: memref<32x8xbf16, #tpu.memory_space<vmem>>, %arg5: memref<64x8xbf16, #tpu.memory_space<vmem>>, %arg6: memref<1x8xf32, #tpu.memory_space<vmem>>, %arg7: memref<1x8xf32, #tpu.memory_space<vmem>>, %arg8: memref<1x8x8x32xbf16, #tpu.memory_space<vmem>>) attributes {dimension_semantics = [#tpu.dimension_semantics<parallel>], iteration_bounds = array<i64: 2>, scalar_prefetch = 0 : i64, scratch_operands = 0 : i64, tpu.core_type = #tpu.core_type<tc>, window_params = [{transform_indices = @transform_0, window_bounds = array<i64: 1, 8, 8, 16>}, {pipeline_mode = #tpu.pipeline_mode<synchronous>, transform_indices = @transform_1, window_bounds = array<i64: 16, 8>}, {pipeline_mode = #tpu.pipeline_mode<synchronous>, transform_indices = @transform_2, window_bounds = array<i64: 32, 8>}, {pipeline_mode = #tpu.pipeline_mode<synchronous>, transform_indices = @transform_3, window_bounds = array<i64: 32, 8>}, {pipeline_mode = #tpu.pipeline_mode<synchronous>, transform_indices = @transform_4, window_bounds = array<i64: 64, 8>}, {pipeline_mode = #tpu.pipeline_mode<synchronous>, transform_indices = @transform_5, window_bounds = array<i64: 1, 8>}, {pipeline_mode = #tpu.pipeline_mode<synchronous>, transform_indices = @transform_6, window_bounds = array<i64: 1, 8>}, {transform_indices = @transform_7, window_bounds = array<i64: 1, 8, 8, 32>}]} {
    %c0 = arith.constant 0 : index
    %c0_0 = arith.constant 0 : index
    %c0_1 = arith.constant 0 : index
    %c0_2 = arith.constant 0 : index
    %0 = vector.load %arg1[%c0, %c0_0, %c0_1, %c0_2] : memref<1x8x8x16xbf16, #tpu.memory_space<vmem>>, vector<1x8x8x16xbf16>
    %1 = vector.shape_cast %0 : vector<1x8x8x16xbf16> to vector<8x8x16xbf16>
    %2 = arith.extf %1 : vector<8x8x16xbf16> to vector<8x8x16xf32>
    %cst = arith.constant 0.000000e+00 : f32
    %3 = vector.broadcast %cst : f32 to vector<8x1x16xf32>
    %cst_3 = arith.constant 0.000000e+00 : f32
    %4 = vector.broadcast %cst_3 : f32 to vector<1x9x16xf32>
    %5 = tpu.concatenate %2, %3 in 1 : vector<8x8x16xf32>, vector<8x1x16xf32> -> vector<8x9x16xf32>
    %6 = tpu.concatenate %5, %4 in 0 : vector<8x9x16xf32>, vector<1x9x16xf32> -> vector<9x9x16xf32>
    %7 = vector.extract_strided_slice %6 {offsets = [0, 0, 0], sizes = [8, 8, 16], strides = [1, 1, 1]} : vector<9x9x16xf32> to vector<8x8x16xf32>
    %8 = vector.shape_cast %7 : vector<8x8x16xf32> to vector<64x16xf32>
    %9 = vector.extract_strided_slice %6 {offsets = [0, 1, 0], sizes = [8, 8, 16], strides = [1, 1, 1]} : vector<9x9x16xf32> to vector<8x8x16xf32>
    %10 = vector.shape_cast %9 : vector<8x8x16xf32> to vector<64x16xf32>
    %11 = vector.extract_strided_slice %6 {offsets = [1, 0, 0], sizes = [8, 8, 16], strides = [1, 1, 1]} : vector<9x9x16xf32> to vector<8x8x16xf32>
    %12 = vector.shape_cast %11 : vector<8x8x16xf32> to vector<64x16xf32>
    %13 = vector.extract_strided_slice %6 {offsets = [1, 1, 0], sizes = [8, 8, 16], strides = [1, 1, 1]} : vector<9x9x16xf32> to vector<8x8x16xf32>
    %14 = vector.shape_cast %13 : vector<8x8x16xf32> to vector<64x16xf32>
    %c0_4 = arith.constant 0 : index
    %c0_5 = arith.constant 0 : index
    %15 = vector.load %arg6[%c0_4, %c0_5] : memref<1x8xf32, #tpu.memory_space<vmem>>, vector<1x8xf32>
    %c0_6 = arith.constant 0 : index
    %c0_7 = arith.constant 0 : index
    %16 = vector.load %arg7[%c0_6, %c0_7] : memref<1x8xf32, #tpu.memory_space<vmem>>, vector<1x8xf32>
    %17 = arith.truncf %8 : vector<64x16xf32> to vector<64x16xbf16>
    %c0_8 = arith.constant 0 : index
    %c0_9 = arith.constant 0 : index
    %18 = vector.load %arg2[%c0_8, %c0_9] : memref<16x8xbf16, #tpu.memory_space<vmem>>, vector<16x8xbf16>
    %cst_10 = arith.constant dense<0.000000e+00> : vector<64x8xf32>
    %19 = tpu.matmul %17, %18, %cst_10 {dimension_numbers = #tpu.dot_dimension_numbers<[1], [0], [0], [1], [0, 0, 1, 1], [], []>} : vector<64x16xbf16>, vector<16x8xbf16>, vector<64x8xf32> -> vector<64x8xf32>
    %20 = vector.broadcast %15 : vector<1x8xf32> to vector<64x8xf32>
    %21 = arith.mulf %19, %20 : vector<64x8xf32>
    %22 = vector.broadcast %16 : vector<1x8xf32> to vector<64x8xf32>
    %23 = arith.addf %21, %22 : vector<64x8xf32>
    %cst_11 = arith.constant 0.000000e+00 : f32
    %24 = vector.broadcast %cst_11 : f32 to vector<64x8xf32>
    %25 = arith.maximumf %23, %24 : vector<64x8xf32>
    %26 = tpu.concatenate %10, %8 in 1 : vector<64x16xf32>, vector<64x16xf32> -> vector<64x32xf32>
    %27 = arith.truncf %26 : vector<64x32xf32> to vector<64x32xbf16>
    %c0_12 = arith.constant 0 : index
    %c0_13 = arith.constant 0 : index
    %28 = vector.load %arg3[%c0_12, %c0_13] : memref<32x8xbf16, #tpu.memory_space<vmem>>, vector<32x8xbf16>
    %cst_14 = arith.constant dense<0.000000e+00> : vector<64x8xf32>
    %29 = tpu.matmul %27, %28, %cst_14 {dimension_numbers = #tpu.dot_dimension_numbers<[1], [0], [0], [1], [0, 0, 1, 1], [], []>} : vector<64x32xbf16>, vector<32x8xbf16>, vector<64x8xf32> -> vector<64x8xf32>
    %30 = vector.broadcast %15 : vector<1x8xf32> to vector<64x8xf32>
    %31 = arith.mulf %29, %30 : vector<64x8xf32>
    %32 = vector.broadcast %16 : vector<1x8xf32> to vector<64x8xf32>
    %33 = arith.addf %31, %32 : vector<64x8xf32>
    %cst_15 = arith.constant 0.000000e+00 : f32
    %34 = vector.broadcast %cst_15 : f32 to vector<64x8xf32>
    %35 = arith.maximumf %33, %34 : vector<64x8xf32>
    %36 = tpu.concatenate %12, %8 in 1 : vector<64x16xf32>, vector<64x16xf32> -> vector<64x32xf32>
    %37 = arith.truncf %36 : vector<64x32xf32> to vector<64x32xbf16>
    %c0_16 = arith.constant 0 : index
    %c0_17 = arith.constant 0 : index
    %38 = vector.load %arg4[%c0_16, %c0_17] : memref<32x8xbf16, #tpu.memory_space<vmem>>, vector<32x8xbf16>
    %cst_18 = arith.constant dense<0.000000e+00> : vector<64x8xf32>
    %39 = tpu.matmul %37, %38, %cst_18 {dimension_numbers = #tpu.dot_dimension_numbers<[1], [0], [0], [1], [0, 0, 1, 1], [], []>} : vector<64x32xbf16>, vector<32x8xbf16>, vector<64x8xf32> -> vector<64x8xf32>
    %40 = vector.broadcast %15 : vector<1x8xf32> to vector<64x8xf32>
    %41 = arith.mulf %39, %40 : vector<64x8xf32>
    %42 = vector.broadcast %16 : vector<1x8xf32> to vector<64x8xf32>
    %43 = arith.addf %41, %42 : vector<64x8xf32>
    %cst_19 = arith.constant 0.000000e+00 : f32
    %44 = vector.broadcast %cst_19 : f32 to vector<64x8xf32>
    %45 = arith.maximumf %43, %44 : vector<64x8xf32>
    %46 = tpu.concatenate %14, %12, %10, %8 in 1 : vector<64x16xf32>, vector<64x16xf32>, vector<64x16xf32>, vector<64x16xf32> -> vector<64x64xf32>
    %47 = arith.truncf %46 : vector<64x64xf32> to vector<64x64xbf16>
    %c0_20 = arith.constant 0 : index
    %c0_21 = arith.constant 0 : index
    %48 = vector.load %arg5[%c0_20, %c0_21] : memref<64x8xbf16, #tpu.memory_space<vmem>>, vector<64x8xbf16>
    %cst_22 = arith.constant dense<0.000000e+00> : vector<64x8xf32>
    %49 = tpu.matmul %47, %48, %cst_22 {dimension_numbers = #tpu.dot_dimension_numbers<[1], [0], [0], [1], [0, 0, 1, 1], [], []>} : vector<64x64xbf16>, vector<64x8xbf16>, vector<64x8xf32> -> vector<64x8xf32>
    %50 = vector.broadcast %15 : vector<1x8xf32> to vector<64x8xf32>
    %51 = arith.mulf %49, %50 : vector<64x8xf32>
    %52 = vector.broadcast %16 : vector<1x8xf32> to vector<64x8xf32>
    %53 = arith.addf %51, %52 : vector<64x8xf32>
    %cst_23 = arith.constant 0.000000e+00 : f32
    %54 = vector.broadcast %cst_23 : f32 to vector<64x8xf32>
    %55 = arith.maximumf %53, %54 : vector<64x8xf32>
    %56 = tpu.concatenate %25, %35, %45, %55 in 1 : vector<64x8xf32>, vector<64x8xf32>, vector<64x8xf32>, vector<64x8xf32> -> vector<64x32xf32>
    %57 = vector.shape_cast %56 : vector<64x32xf32> to vector<1x8x8x32xf32>
    %58 = arith.truncf %57 : vector<1x8x8x32xf32> to vector<1x8x8x32xbf16>
    %c0_24 = arith.constant 0 : index
    %c0_25 = arith.constant 0 : index
    %c0_26 = arith.constant 0 : index
    %c0_27 = arith.constant 0 : index
    %59 = vector.load %arg8[%c0_24, %c0_25, %c0_26, %c0_27] : memref<1x8x8x32xbf16, #tpu.memory_space<vmem>>, vector<1x8x8x32xbf16>
    tpu.vector_store %arg8[%c0_24, %c0_25, %c0_26, %c0_27], %58 {strides = array<i32>} : memref<1x8x8x32xbf16, #tpu.memory_space<vmem>>, vector<1x8x8x32xbf16>,
    return
  }
  func.func @transform_0(%arg0: i32) -> (i32, i32, i32, i32) {
    %c0_i32 = arith.constant 0 : i32
    %c0_i32_0 = arith.constant 0 : i32
    %c0_i32_1 = arith.constant 0 : i32
    %c0_i32_2 = arith.constant 0 : i32
    return %arg0, %c0_i32, %c0_i32_0, %c0_i32_1 : i32, i32, i32, i32
  }
  func.func @transform_1(%arg0: i32) -> (i32, i32) {
    %c0_i32 = arith.constant 0 : i32
    %c0_i32_0 = arith.constant 0 : i32
    %c0_i32_1 = arith.constant 0 : i32
    return %c0_i32, %c0_i32_0 : i32, i32
  }
  func.func @transform_2(%arg0: i32) -> (i32, i32) {
    %c0_i32 = arith.constant 0 : i32
    %c0_i32_0 = arith.constant 0 : i32
    %c0_i32_1 = arith.constant 0 : i32
    return %c0_i32, %c0_i32_0 : i32, i32
  }
  func.func @transform_3(%arg0: i32) -> (i32, i32) {
    %c0_i32 = arith.constant 0 : i32
    %c0_i32_0 = arith.constant 0 : i32
    %c0_i32_1 = arith.constant 0 : i32
    return %c0_i32, %c0_i32_0 : i32, i32
  }
  func.func @transform_4(%arg0: i32) -> (i32, i32) {
    %c0_i32 = arith.constant 0 : i32
    %c0_i32_0 = arith.constant 0 : i32
    %c0_i32_1 = arith.constant 0 : i32
    return %c0_i32, %c0_i32_0 : i32, i32
  }
  func.func @transform_5(%arg0: i32) -> (i32, i32) {
    %c0_i32 = arith.constant 0 : i32
    %c0_i32_0 = arith.constant 0 : i32
    %c0_i32_1 = arith.constant 0 : i32
    return %c0_i32, %c0_i32_0 : i32, i32
  }
  func.func @transform_6(%arg0: i32) -> (i32, i32) {
    %c0_i32 = arith.constant 0 : i32
    %c0_i32_0 = arith.constant 0 : i32
    %c0_i32_1 = arith.constant 0 : i32
    return %c0_i32, %c0_i32_0 : i32, i32
  }
  func.func @transform_7(%arg0: i32) -> (i32, i32, i32, i32) {
    %c0_i32 = arith.constant 0 : i32
    %c0_i32_0 = arith.constant 0 : i32
    %c0_i32_1 = arith.constant 0 : i32
    %c0_i32_2 = arith.constant 0 : i32
    return %arg0, %c0_i32, %c0_i32_0, %c0_i32_1 : i32, i32, i32, i32
  }
}

</mosaic_0001>

<llo_original>
// kernel: tpu_custom_call.1
$region0: #{tpu_custom_call.1}
  #allocation0 [shape = 'u32[]', space=smem, size = 0x4, offset = 0x4, fixed_abs, tag = 'smem constant byte address 0x4 - core index']
  #allocation1 [shape = 'u32[144,128]{1,0:T(1,128)}', space=vmem, size = 0x12000, scoped, tag = 'internal scratch']
  %s0 = inlined_call_operand.vmem [shape: bf16[2,8,8,16], index: 0, kind: input, shape index: {}]
  %s1 = inlined_call_operand.vmem [shape: bf16[16,8], index: 1, kind: input, shape index: {}]
  %s2 = inlined_call_operand.vmem [shape: bf16[32,8], index: 2, kind: input, shape index: {}]
  %s3 = inlined_call_operand.vmem [shape: bf16[32,8], index: 3, kind: input, shape index: {}]
  %s4 = inlined_call_operand.vmem [shape: bf16[64,8], index: 4, kind: input, shape index: {}]
  %s5 = inlined_call_operand.vmem [shape: f32[1,8], index: 5, kind: input, shape index: {}]
  %s6 = inlined_call_operand.vmem [shape: f32[1,8], index: 6, kind: input, shape index: {}]
  %s7 = inlined_call_operand.hbm [shape: bf16[2,8,8,32], index: 7, kind: output, shape index: {}]
  %s8 = sld [smem:[#allocation0]]
  $region61: #{tpu_custom_call.1} parent=0
    _
  %s10 = ssub.s32 1, %s8
  %s11 = scalar_select 0, %s10, %s8
  $region1: #{tpu_custom_call.1} parent=0
    #allocation2 [shape = 'u8[32768]{0}', space=vmem, size = 0x8000, scoped, tag = 'output window, operand 0']
    #allocation3 [shape = 's32[2]{0}', space=sflag, size = 0x8, scoped, tag = 'scoped memory for tpu_custom_call.1']
    %12 = vsyncpa [#allocation3], 0
    %s13 = scalar_lea.sflag [#allocation3], 1
    %14 = vsyncpa %s13, 0
    loop: start=0, step=1, limit=4
    $region2: #{tpu_custom_call.1} parent=1 // loop_pre_header
      _
    $region3: #{tpu_custom_call.1} parent=1 // loop_header
      %s16 = sphi 0, %s20
      %p17 = scmp.ge.s32.totalorder %s16, 4
      %s26 = sphi 0, %s28
      %s29 = sphi 0, %s26
      %s30 = sphi 0, %s29
      %s46 = sphi 0, %s30
      %s50 = sphi 0, %s50
      %s52 = sphi 0, %s50
      %s53 = sphi 0, %s52
      %s67 = sphi 0, %s53
      %s71 = sphi 0, %s71
      %s73 = sphi 0, %s71
      %s74 = sphi 0, %s73
      %s88 = sphi 0, %s74
      %s92 = sphi 0, %s92
      %s94 = sphi 0, %s92
      %s95 = sphi 0, %s94
      %s109 = sphi 0, %s95
      %s113 = sphi 0, %s113
      %s115 = sphi 0, %s113
      %s116 = sphi 0, %s115
      %s130 = sphi 0, %s116
      %s134 = sphi 0, %s134
      %s136 = sphi 0, %s134
      %s137 = sphi 0, %s136
      %s151 = sphi 0, %s137
      %s155 = sphi 0, %s155
      %s157 = sphi 0, %s155
      %s158 = sphi 0, %s157
      %s172 = sphi 0, %s158
      %s178 = sphi 0, %s180
      %s181 = sphi 0, %s178
      %s182 = sphi 0, %s181
      %s198 = sphi 0, %s182
    $region4: #{tpu_custom_call.1} parent=1 // loop_header_branch
      %19 = sbr.rel (%p17) target = $region8
    $region5: #{tpu_custom_call.1} parent=1 // loop_body
      %s21 = ssub.s32 %s16, 1
      %s22 = ssub.s32 %s16, 2
      %s23 = sadd.s32 %s16, 1
      %s24 = ssub.s32 %s16, %s23
      %p25 = scmp.eq.s32.totalorder %s24, 0
      %s27 = sadd.s32 %s26, 1
      %s28 = scalar_select %p25, %s26, %s27
      %p31 = pneg %p25
      %p32 = scmp.eq.s32.totalorder %s16, 1
      %p33 = por %p31, %p32
      %p34 = scmp.ne.s32.totalorder %s26, %s29
      %p35 = scmp.eq.s32.totalorder %s16, 0
      %p36 = por %p34, %p35
      %p37 = scmp.ne.s32.totalorder %s26, %s29
      %p38 = scmp.eq.s32.totalorder %s21, 1
      %p39 = por %p37, %p38
      %p40 = scmp.ne.s32.totalorder %s29, %s30
      %p41 = scmp.eq.s32.totalorder %s21, 0
      %p42 = por %p40, %p41
      %p43 = scmp.ne.s32.totalorder %s29, %s30
      %p44 = scmp.eq.s32.totalorder %s22, 1
      %p45 = por %p43, %p44
      %p47 = scmp.ne.s32.totalorder %s30, %s46
      %p48 = scmp.eq.s32.totalorder %s22, 0
      %p49 = por %p47, %p48
      %s51 = sadd.s32 %s50, 1
      %p54 = scmp.eq.s32.totalorder %s16, 1
      %p55 = scmp.ne.s32.totalorder %s50, %s52
      %p56 = scmp.eq.s32.totalorder %s16, 0
      %p57 = por %p55, %p56
      %p58 = scmp.ne.s32.totalorder %s50, %s52
      %p59 = scmp.eq.s32.totalorder %s21, 1
      %p60 = por %p58, %p59
      %p61 = scmp.ne.s32.totalorder %s52, %s53
      %p62 = scmp.eq.s32.totalorder %s21, 0
      %p63 = por %p61, %p62
      %p64 = scmp.ne.s32.totalorder %s52, %s53
      %p65 = scmp.eq.s32.totalorder %s22, 1
      %p66 = por %p64, %p65
      %p68 = scmp.ne.s32.totalorder %s53, %s67
      %p69 = scmp.eq.s32.totalorder %s22, 0
      %p70 = por %p68, %p69
      %s72 = sadd.s32 %s71, 1
      %p75 = scmp.eq.s32.totalorder %s16, 1
      %p76 = scmp.ne.s32.totalorder %s71, %s73
      %p77 = scmp.eq.s32.totalorder %s16, 0
      %p78 = por %p76, %p77
      %p79 = scmp.ne.s32.totalorder %s71, %s73
      %p80 = scmp.eq.s32.totalorder %s21, 1
      %p81 = por %p79, %p80
      %p82 = scmp.ne.s32.totalorder %s73, %s74
      %p83 = scmp.eq.s32.totalorder %s21, 0
      %p84 = por %p82, %p83
      %p85 = scmp.ne.s32.totalorder %s73, %s74
      %p86 = scmp.eq.s32.totalorder %s22, 1
      %p87 = por %p85, %p86
      %p89 = scmp.ne.s32.totalorder %s74, %s88
      %p90 = scmp.eq.s32.totalorder %s22, 0
      %p91 = por %p89, %p90
      %s93 = sadd.s32 %s92, 1
      %p96 = scmp.eq.s32.totalorder %s16, 1
      %p97 = scmp.ne.s32.totalorder %s92, %s94
      %p98 = scmp.eq.s32.totalorder %s16, 0
      %p99 = por %p97, %p98
      %p100 = scmp.ne.s32.totalorder %s92, %s94
      %p101 = scmp.eq.s32.totalorder %s21, 1
      %p102 = por %p100, %p101
      %p103 = scmp.ne.s32.totalorder %s94, %s95
      %p104 = scmp.eq.s32.totalorder %s21, 0
      %p105 = por %p103, %p104
      %p106 = scmp.ne.s32.totalorder %s94, %s95
      %p107 = scmp.eq.s32.totalorder %s22, 1
      %p108 = por %p106, %p107
      %p110 = scmp.ne.s32.totalorder %s95, %s109
      %p111 = scmp.eq.s32.totalorder %s22, 0
      %p112 = por %p110, %p111
      %s114 = sadd.s32 %s113, 1
      %p117 = scmp.eq.s32.totalorder %s16, 1
      %p118 = scmp.ne.s32.totalorder %s113, %s115
      %p119 = scmp.eq.s32.totalorder %s16, 0
      %p120 = por %p118, %p119
      %p121 = scmp.ne.s32.totalorder %s113, %s115
      %p122 = scmp.eq.s32.totalorder %s21, 1
      %p123 = por %p121, %p122
      %p124 = scmp.ne.s32.totalorder %s115, %s116
      %p125 = scmp.eq.s32.totalorder %s21, 0
      %p126 = por %p124, %p125
      %p127 = scmp.ne.s32.totalorder %s115, %s116
      %p128 = scmp.eq.s32.totalorder %s22, 1
      %p129 = por %p127, %p128
      %p131 = scmp.ne.s32.totalorder %s116, %s130
      %p132 = scmp.eq.s32.totalorder %s22, 0
      %p133 = por %p131, %p132
      %s135 = sadd.s32 %s134, 1
      %p138 = scmp.eq.s32.totalorder %s16, 1
      %p139 = scmp.ne.s32.totalorder %s134, %s136
      %p140 = scmp.eq.s32.totalorder %s16, 0
      %p141 = por %p139, %p140
      %p142 = scmp.ne.s32.totalorder %s134, %s136
      %p143 = scmp.eq.s32.totalorder %s21, 1
      %p144 = por %p142, %p143
      %p145 = scmp.ne.s32.totalorder %s136, %s137
      %p146 = scmp.eq.s32.totalorder %s21, 0
      %p147 = por %p145, %p146
      %p148 = scmp.ne.s32.totalorder %s136, %s137
      %p149 = scmp.eq.s32.totalorder %s22, 1
      %p150 = por %p148, %p149
      %p152 = scmp.ne.s32.totalorder %s137, %s151
      %p153 = scmp.eq.s32.totalorder %s22, 0
      %p154 = por %p152, %p153
      %s156 = sadd.s32 %s155, 1
      %p159 = scmp.eq.s32.totalorder %s16, 1
      %p160 = scmp.ne.s32.totalorder %s155, %s157
      %p161 = scmp.eq.s32.totalorder %s16, 0
      %p162 = por %p160, %p161
      %p163 = scmp.ne.s32.totalorder %s155, %s157
      %p164 = scmp.eq.s32.totalorder %s21, 1
      %p165 = por %p163, %p164
      %p166 = scmp.ne.s32.totalorder %s157, %s158
      %p167 = scmp.eq.s32.totalorder %s21, 0
      %p168 = por %p166, %p167
      %p169 = scmp.ne.s32.totalorder %s157, %s158
      %p170 = scmp.eq.s32.totalorder %s22, 1
      %p171 = por %p169, %p170
      %p173 = scmp.ne.s32.totalorder %s158, %s172
      %p174 = scmp.eq.s32.totalorder %s22, 0
      %p175 = por %p173, %p174
      %s176 = ssub.s32 %s16, %s23
      %p177 = scmp.eq.s32.totalorder %s176, 0
      %s179 = sadd.s32 %s178, 1
      %s180 = scalar_select %p177, %s178, %s179
      %p183 = pneg %p177
      %p184 = scmp.eq.s32.totalorder %s16, 1
      %p185 = por %p183, %p184
      %p186 = scmp.ne.s32.totalorder %s178, %s181
      %p187 = scmp.eq.s32.totalorder %s16, 0
      %p188 = por %p186, %p187
      %p189 = scmp.ne.s32.totalorder %s178, %s181
      %p190 = scmp.eq.s32.totalorder %s21, 1
      %p191 = por %p189, %p190
      %p192 = scmp.ne.s32.totalorder %s181, %s182
      %p193 = scmp.eq.s32.totalorder %s21, 0
      %p194 = por %p192, %p193
      %p195 = scmp.ne.s32.totalorder %s181, %s182
      %p196 = scmp.eq.s32.totalorder %s22, 1
      %p197 = por %p195, %p196
      %p199 = scmp.ne.s32.totalorder %s182, %s198
      %p200 = scmp.eq.s32.totalorder %s22, 0
      %p201 = por %p199, %p200
      %p202 = scmp.le.s32.totalorder 1, %s16
      %p203 = scmp.lt.s32.totalorder %s16, 3
      %p204 = pnand %p202, %p203
      %p205 = pneg %p204
      // Predicated region
      $region9: #{tpu_custom_call.1} parent=5 // pred_check
        _
      $region10: #{tpu_custom_call.1} parent=5 // pred_check_branch
        %207 = sbr.rel (%p204) target = $region12
      $region11: #{tpu_custom_call.1} parent=5 // pred_region
        %s208 = ssub.s32 %s16, 1
        // Predicated region
        $region13: #{tpu_custom_call.1} parent=11 // pred_check
          %p209 = pneg %p63
        $region14: #{tpu_custom_call.1} parent=11 // pred_check_branch
          %211 = sbr.rel (%p209) target = $region16
        $region15: #{tpu_custom_call.1} parent=11 // pred_region
          _
        $region16: #{tpu_custom_call.1} parent=11 // pred_fallthru
          _
        // Predicated region
        $region17: #{tpu_custom_call.1} parent=11 // pred_check
          %p212 = pneg %p84
        $region18: #{tpu_custom_call.1} parent=11 // pred_check_branch
          %214 = sbr.rel (%p212) target = $region20
        $region19: #{tpu_custom_call.1} parent=11 // pred_region
          _
        $region20: #{tpu_custom_call.1} parent=11 // pred_fallthru
          _
        // Predicated region
        $region21: #{tpu_custom_call.1} parent=11 // pred_check
          %p215 = pneg %p105
        $region22: #{tpu_custom_call.1} parent=11 // pred_check_branch
          %217 = sbr.rel (%p215) target = $region24
        $region23: #{tpu_custom_call.1} parent=11 // pred_region
          _
        $region24: #{tpu_custom_call.1} parent=11 // pred_fallthru
          _
        // Predicated region
        $region25: #{tpu_custom_call.1} parent=11 // pred_check
          %p218 = pneg %p126
        $region26: #{tpu_custom_call.1} parent=11 // pred_check_branch
          %220 = sbr.rel (%p218) target = $region28
        $region27: #{tpu_custom_call.1} parent=11 // pred_region
          _
        $region28: #{tpu_custom_call.1} parent=11 // pred_fallthru
          _
        // Predicated region
        $region29: #{tpu_custom_call.1} parent=11 // pred_check
          %p221 = pneg %p147
        $region30: #{tpu_custom_call.1} parent=11 // pred_check_branch
          %223 = sbr.rel (%p221) target = $region32
        $region31: #{tpu_custom_call.1} parent=11 // pred_region
          _
        $region32: #{tpu_custom_call.1} parent=11 // pred_fallthru
          _
        // Predicated region
        $region33: #{tpu_custom_call.1} parent=11 // pred_check
          %p224 = pneg %p168
        $region34: #{tpu_custom_call.1} parent=11 // pred_check_branch
          %226 = sbr.rel (%p224) target = $region36
        $region35: #{tpu_custom_call.1} parent=11 // pred_region
          _
        $region36: #{tpu_custom_call.1} parent=11 // pred_fallthru
          _
      $region12: #{tpu_custom_call.1} parent=5 // pred_fallthru
        _
      %p227 = scmp.lt.s32.totalorder %s16, 2
      // Predicated region
      $region37: #{tpu_custom_call.1} parent=5 // pred_check
        %p228 = pneg %p227
      $region38: #{tpu_custom_call.1} parent=5 // pred_check_branch
        %230 = sbr.rel (%p228) target = $region40
      $region39: #{tpu_custom_call.1} parent=5 // pred_region
        // Predicated region
        $region41: #{tpu_custom_call.1} parent=39 // pred_check
          %p231 = pneg %p36
        $region42: #{tpu_custom_call.1} parent=39 // pred_check_branch
          %233 = sbr.rel (%p231) target = $region44
        $region43: #{tpu_custom_call.1} parent=39 // pred_region
          %p234 = scmp.lt.s32.totalorder %s16, 1
          %s235 = scalar_select %p234, %s16, 1
          %s236 = smul.addr %s235, 8
          %s237 = smul.addr %s236, 4
          %s238 = scalar_lea.vmem %s0, %s237
        $region44: #{tpu_custom_call.1} parent=39 // pred_fallthru
          _
      $region40: #{tpu_custom_call.1} parent=5 // pred_fallthru
        _
      %p239 = scmp.le.s32.totalorder 1, %s16
      %p240 = scmp.lt.s32.totalorder %s16, 3
      %p241 = pnand %p239, %p240
      %p242 = pneg %p241
      // Predicated region
      $region45: #{tpu_custom_call.1} parent=5 // pred_check
        _
      $region46: #{tpu_custom_call.1} parent=5 // pred_check_branch
        %244 = sbr.rel (%p241) target = $region48
      $region47: #{tpu_custom_call.1} parent=5 // pred_region
        %s245 = ssub.s32 %s16, 1
        %p246 = scmp.lt.s32.totalorder %s21, 1
        %s247 = scalar_select %p246, %s21, 1
        %s248 = smul.addr %s247, 8
        %s249 = smul.addr %s248, 4
        %s250 = scalar_lea.vmem %s0, %s249
        %p251 = pneg %p42
        %p252 = pneg %p39
        %p253 = pneg %p63
        %p254 = pneg %p60
        %p255 = pneg %p84
        %p256 = pneg %p81
        %p257 = pneg %p105
        %p258 = pneg %p102
        %p259 = pneg %p126
        %p260 = pneg %p123
        %p261 = pneg %p147
        %p262 = pneg %p144
        %p263 = pneg %p168
        %p264 = pneg %p165
        %p265 = pneg %p194
        %p266 = pneg %p191
        %s267 = sand.u32 %s181, 1
        %s268 = scalar_lea.sflag [#allocation3], %s267
        %s269 = sand.u32 %s181, 1
        %s270 = smul.addr %s269, 32
        %s271 = scalar_lea.vmem [#allocation2], %s270
        %p272 = scmp.lt.s32.totalorder %s21, 1
        %s273 = scalar_select %p272, %s21, 1
        %s274 = smul.addr %s273, 8
        %s275 = smul.addr %s274, 4
        %s276 = scalar_lea.vmem %s0, %s275
        %v278 = vld [vmem:[%s276] sm:$0xf]
        %v279 = vld [vmem:[%s276 + $0x4] sm:$0xf]
        %v280 = vld [vmem:[%s276 + $0x8] sm:$0xf]
        %v281 = vld [vmem:[%s276 + $0xc] sm:$0xf]
        %v282 = vld [vmem:[%s276 + $0x10] sm:$0xf]
        %v283 = vld [vmem:[%s276 + $0x14] sm:$0xf]
        %v284 = vld [vmem:[%s276 + $0x18] sm:$0xf]
        %v285 = vld [vmem:[%s276 + $0x1c] sm:$0xf]
        %v286 = vunpack.c.l.bf16 %v278
        %v287 = vunpack.c.l.bf16 %v279
        %v288 = vunpack.c.l.bf16 %v280
        %v289 = vunpack.c.l.bf16 %v281
        %v290 = vunpack.c.l.bf16 %v282
        %v291 = vunpack.c.l.bf16 %v283
        %v292 = vunpack.c.l.bf16 %v284
        %v293 = vunpack.c.l.bf16 %v285
        %vm303 = vcmask 1046528
        %v304 = vrot.slane %v286, 1
        %v305 = vrot.slane 0.0, 1
        %v306 = vsel %vm303, %v304, %v305
        %v307 = vrot.slane %v287, 1
        %v308 = vsel %vm303, %v307, %v305
        %v309 = vrot.slane %v288, 1
        %v310 = vsel %vm303, %v309, %v305
        %v311 = vrot.slane %v289, 1
        %v312 = vsel %vm303, %v311, %v305
        %v313 = vrot.slane %v290, 1
        %v314 = vsel %vm303, %v313, %v305
        %v315 = vrot.slane %v291, 1
        %v316 = vsel %vm303, %v315, %v305
        %v317 = vrot.slane %v292, 1
        %v318 = vsel %vm303, %v317, %v305
        %v319 = vrot.slane %v293, 1
        %v320 = vsel %vm303, %v319, %v305
        %v329 = vsel %vm303, %v305, %v305
        %v331 = vld [vmem:[%s5] sm:$0x1]
        %v332 = vld [vmem:[%s6] sm:$0x1]
        %v333 = vpack.c.bf16 %v287, %v286
        %v334 = vpack.c.bf16 %v289, %v288
        %v335 = vpack.c.bf16 %v291, %v290
        %v336 = vpack.c.bf16 %v293, %v292
        %v337 = vld [vmem:[%s1] sm:$0xf]
        %v338 = vld [vmem:[%s1 + $0x4] sm:$0xf]
        %v341 = vunpack.c.l.b16 %v337
        %v342 = vunpack.c.l.b16 %v338
        %v343 = vpack.c.b16 %v342, %v341
        %vm345 = vcmask 130048
        %v347 = vsel %vm345, %v333, 0
        %v350 = vsel %vm345, %v334, 0
        %v353 = vsel %vm345, %v335, 0
        %v356 = vsel %vm345, %v336, 0
        %358 = vmatprep.subr.bf16.mxu0 0
        %359 = vmatpush1.bf16.msra.mxu0 %v343
        %360 = vmatprep.subr.bf16.mxu0 0
        %361 = vmatpush1.bf16.msra.mxu0 0
        %362 = vmatprep.subr.bf16.mxu0 0
        %363 = vmatpush1.bf16.msra.mxu0 0
        %364 = vmatprep.subr.bf16.mxu0 0
        %365 = vmatpush1.bf16.msra.mxu0 0
        %366 = vmatprep.subr.bf16.mxu0 0
        %367 = vmatpush1.bf16.msra.mxu0 0
        %368 = vmatprep.subr.bf16.mxu0 0
        %369 = vmatpush1.bf16.msra.mxu0 0
        %370 = vmatprep.subr.bf16.mxu0 0
        %371 = vmatpush1.bf16.msra.mxu0 0
        %372 = vmatprep.subr.bf16.mxu0 0
        %373 = vmatpush1.bf16.msra.mxu0 0
        %374 = vmatprep.subr.bf16.mxu0 0
        %375 = vmatpush1.bf16.msra.mxu0 0
        %376 = vmatprep.subr.bf16.mxu0 0
        %377 = vmatpush1.bf16.msra.mxu0 0
        %378 = vmatprep.subr.bf16.mxu0 0
        %379 = vmatpush1.bf16.msra.mxu0 0
        %380 = vmatprep.subr.bf16.mxu0 0
        %381 = vmatpush1.bf16.msra.mxu0 0
        %382 = vmatprep.subr.bf16.mxu0 0
        %383 = vmatpush1.bf16.msra.mxu0 0
        %384 = vmatprep.subr.bf16.mxu0 0
        %385 = vmatpush1.bf16.msra.mxu0 0
        %386 = vmatprep.subr.bf16.mxu0 0
        %387 = vmatpush1.bf16.msra.mxu0 0
        %388 = vmatprep.subr.bf16.mxu0 0
        %389 = vmatpush1.bf16.msra.mxu0 0
        %390 = vmatprep.mubr.bf16.mxu0 0
        %391 = vmatmul.mubr.bf16.gmra.mrb[0].mxu0 %v347
        %v392 = vpop.f32.mrb[0].mxu0
        %v393 = vadd.f32 0.0, %v392
        %v394 = vpop.f32.mrb[0].mxu0
        %v395 = vpop.f32.mrb[0].mxu0
        %v396 = vadd.f32 0.0, %v395
        %v397 = vpop.f32.mrb[0].mxu0
        %398 = vmatprep.mubr.bf16.mxu0 0
        %399 = vmatmul.mubr.bf16.gmra.mrb[0].mxu0 %v350
        %v400 = vpop.f32.mrb[0].mxu0
        %v401 = vadd.f32 0.0, %v400
        %v402 = vpop.f32.mrb[0].mxu0
        %v403 = vpop.f32.mrb[0].mxu0
        %v404 = vadd.f32 0.0, %v403
        %v405 = vpop.f32.mrb[0].mxu0
        %406 = vmatprep.mubr.bf16.mxu0 0
        %407 = vmatmul.mubr.bf16.gmra.mrb[0].mxu0 %v353
        %v408 = vpop.f32.mrb[0].mxu0
        %v409 = vadd.f32 0.0, %v408
        %v410 = vpop.f32.mrb[0].mxu0
        %v411 = vpop.f32.mrb[0].mxu0
        %v412 = vadd.f32 0.0, %v411
        %v413 = vpop.f32.mrb[0].mxu0
        %414 = vmatprep.mubr.bf16.mxu0 0
        %415 = vmatmul.mubr.bf16.gmra.mrb[0].mxu0 %v356
        %v416 = vpop.f32.mrb[0].mxu0
        %v417 = vadd.f32 0.0, %v416
        %v418 = vpop.f32.mrb[0].mxu0
        %v419 = vpop.f32.mrb[0].mxu0
        %v420 = vadd.f32 0.0, %v419
        %v421 = vpop.f32.mrb[0].mxu0
        %422 = vdwg.mxu0
        %v424 = vlaneseq
        %v425 = vshrl.u32 %v424, 7
        %v426 = vsub.s32 0, %v425
        %v427 = vrot.slane %v331, %v426
        %v429 = vmul.f32 %v393, %v427
        %v430 = vmul.f32 %v396, %v427
        %v431 = vmul.f32 %v401, %v427
        %v432 = vmul.f32 %v404, %v427
        %v433 = vmul.f32 %v409, %v427
        %v434 = vmul.f32 %v412, %v427
        %v435 = vmul.f32 %v417, %v427
        %v436 = vmul.f32 %v420, %v427
        %v438 = vlaneseq
        %v439 = vshrl.u32 %v438, 7
        %v440 = vsub.s32 0, %v439
        %v441 = vrot.slane %v332, %v440
        %v443 = vadd.f32 %v429, %v441
        %v444 = vadd.f32 %v430, %v441
        %v445 = vadd.f32 %v431, %v441
        %v446 = vadd.f32 %v432, %v441
        %v447 = vadd.f32 %v433, %v441
        %v448 = vadd.f32 %v434, %v441
        %v449 = vadd.f32 %v435, %v441
        %v450 = vadd.f32 %v436, %v441
        %v451 = vmax.f32 %v443, 0.0
        %v452 = vmax.f32 %v444, 0.0
        %v453 = vmax.f32 %v445, 0.0
        %v454 = vmax.f32 %v446, 0.0
        %v455 = vmax.f32 %v447, 0.0
        %v456 = vmax.f32 %v448, 0.0
        %v457 = vmax.f32 %v449, 0.0
        %v458 = vmax.f32 %v450, 0.0
        %459 = vrot.lane.b32.xlu0 %v286, 16
        %v460 = vpop.permute.xlu0 %459
        %461 = vrot.lane.b32.xlu0 %v287, 16
        %v462 = vpop.permute.xlu0 %461
        %463 = vrot.lane.b32.xlu0 %v288, 16
        %v464 = vpop.permute.xlu0 %463
        %465 = vrot.lane.b32.xlu0 %v289, 16
        %v466 = vpop.permute.xlu0 %465
        %467 = vrot.lane.b32.xlu0 %v290, 16
        %v468 = vpop.permute.xlu0 %467
        %469 = vrot.lane.b32.xlu0 %v291, 16
        %v470 = vpop.permute.xlu0 %469
        %471 = vrot.lane.b32.xlu0 %v292, 16
        %v472 = vpop.permute.xlu0 %471
        %473 = vrot.lane.b32.xlu0 %v293, 16
        %v474 = vpop.permute.xlu0 %473
        %v483 = vsel %vm345, %v306, %v460
        %v484 = vsel %vm345, %v308, %v462
        %v485 = vsel %vm345, %v310, %v464
        %v486 = vsel %vm345, %v312, %v466
        %v487 = vsel %vm345, %v314, %v468
        %v488 = vsel %vm345, %v316, %v470
        %v489 = vsel %vm345, %v318, %v472
        %v490 = vsel %vm345, %v320, %v474
        %v491 = vpack.c.bf16 %v484, %v483
        %v492 = vpack.c.bf16 %v486, %v485
        %v493 = vpack.c.bf16 %v488, %v487
        %v494 = vpack.c.bf16 %v490, %v489
        %v495 = vld [vmem:[%s2] sm:$0xf]
        %v496 = vld [vmem:[%s2 + $0x4] sm:$0xf]
        %v497 = vld [vmem:[%s2 + $0x8] sm:$0xf]
        %v498 = vld [vmem:[%s2 + $0xc] sm:$0xf]
        %v503 = vunpack.c.l.b16 %v495
        %v504 = vunpack.c.l.b16 %v496
        %v505 = vunpack.c.l.b16 %v497
        %v506 = vunpack.c.l.b16 %v498
        %v507 = vpack.c.b16 %v504, %v503
        %v508 = vpack.c.b16 %v506, %v505
        %vm511 = vcmask 261120
        %v513 = vsel %vm511, %v491, 0
        %v516 = vsel %vm511, %v492, 0
        %v519 = vsel %vm511, %v493, 0
        %v522 = vsel %vm511, %v494, 0
        %524 = vmatprep.subr.bf16.mxu0 0
        %525 = vmatpush1.bf16.msra.mxu0 %v507
        %526 = vmatprep.subr.bf16.mxu0 0
        %527 = vmatpush1.bf16.msra.mxu0 %v508
        %528 = vmatprep.subr.bf16.mxu0 0
        %529 = vmatpush1.bf16.msra.mxu0 0
        %530 = vmatprep.subr.bf16.mxu0 0
        %531 = vmatpush1.bf16.msra.mxu0 0
        %532 = vmatprep.subr.bf16.mxu0 0
        %533 = vmatpush1.bf16.msra.mxu0 0
        %534 = vmatprep.subr.bf16.mxu0 0
        %535 = vmatpush1.bf16.msra.mxu0 0
        %536 = vmatprep.subr.bf16.mxu0 0
        %537 = vmatpush1.bf16.msra.mxu0 0
        %538 = vmatprep.subr.bf16.mxu0 0
        %539 = vmatpush1.bf16.msra.mxu0 0
        %540 = vmatprep.subr.bf16.mxu0 0
        %541 = vmatpush1.bf16.msra.mxu0 0
        %542 = vmatprep.subr.bf16.mxu0 0
        %543 = vmatpush1.bf16.msra.mxu0 0
        %544 = vmatprep.subr.bf16.mxu0 0
        %545 = vmatpush1.bf16.msra.mxu0 0
        %546 = vmatprep.subr.bf16.mxu0 0
        %547 = vmatpush1.bf16.msra.mxu0 0
        %548 = vmatprep.subr.bf16.mxu0 0
        %549 = vmatpush1.bf16.msra.mxu0 0
        %550 = vmatprep.subr.bf16.mxu0 0
        %551 = vmatpush1.bf16.msra.mxu0 0
        %552 = vmatprep.subr.bf16.mxu0 0
        %553 = vmatpush1.bf16.msra.mxu0 0
        %554 = vmatprep.subr.bf16.mxu0 0
        %555 = vmatpush1.bf16.msra.mxu0 0
        %556 = vmatprep.mubr.bf16.mxu0 0
        %557 = vmatmul.mubr.bf16.gmra.mrb[0].mxu0 %v513
        %v558 = vpop.f32.mrb[0].mxu0
        %v559 = vadd.f32 0.0, %v558
        %v560 = vpop.f32.mrb[0].mxu0
        %v561 = vpop.f32.mrb[0].mxu0
        %v562 = vadd.f32 0.0, %v561
        %v563 = vpop.f32.mrb[0].mxu0
        %564 = vmatprep.mubr.bf16.mxu0 0
        %565 = vmatmul.mubr.bf16.gmra.mrb[0].mxu0 %v516
        %v566 = vpop.f32.mrb[0].mxu0
        %v567 = vadd.f32 0.0, %v566
        %v568 = vpop.f32.mrb[0].mxu0
        %v569 = vpop.f32.mrb[0].mxu0
        %v570 = vadd.f32 0.0, %v569
        %v571 = vpop.f32.mrb[0].mxu0
        %572 = vmatprep.mubr.bf16.mxu0 0
        %573 = vmatmul.mubr.bf16.gmra.mrb[0].mxu0 %v519
        %v574 = vpop.f32.mrb[0].mxu0
        %v575 = vadd.f32 0.0, %v574
        %v576 = vpop.f32.mrb[0].mxu0
        %v577 = vpop.f32.mrb[0].mxu0
        %v578 = vadd.f32 0.0, %v577
        %v579 = vpop.f32.mrb[0].mxu0
        %580 = vmatprep.mubr.bf16.mxu0 0
        %581 = vmatmul.mubr.bf16.gmra.mrb[0].mxu0 %v522
        %v582 = vpop.f32.mrb[0].mxu0
        %v583 = vadd.f32 0.0, %v582
        %v584 = vpop.f32.mrb[0].mxu0
        %v585 = vpop.f32.mrb[0].mxu0
        %v586 = vadd.f32 0.0, %v585
        %v587 = vpop.f32.mrb[0].mxu0
        %588 = vdwg.mxu0
        %v589 = vmul.f32 %v559, %v427
        %v590 = vmul.f32 %v562, %v427
        %v591 = vmul.f32 %v567, %v427
        %v592 = vmul.f32 %v570, %v427
        %v593 = vmul.f32 %v575, %v427
        %v594 = vmul.f32 %v578, %v427
        %v595 = vmul.f32 %v583, %v427
        %v596 = vmul.f32 %v586, %v427
        %v597 = vadd.f32 %v589, %v441
        %v598 = vadd.f32 %v590, %v441
        %v599 = vadd.f32 %v591, %v441
        %v600 = vadd.f32 %v592, %v441
        %v601 = vadd.f32 %v593, %v441
        %v602 = vadd.f32 %v594, %v441
        %v603 = vadd.f32 %v595, %v441
        %v604 = vadd.f32 %v596, %v441
        %v605 = vmax.f32 %v597, 0.0
        %v606 = vmax.f32 %v598, 0.0
        %v607 = vmax.f32 %v599, 0.0
        %v608 = vmax.f32 %v600, 0.0
        %v609 = vmax.f32 %v601, 0.0
        %v610 = vmax.f32 %v602, 0.0
        %v611 = vmax.f32 %v603, 0.0
        %v612 = vmax.f32 %v604, 0.0
        %v613 = vsel %vm345, %v287, %v460
        %v614 = vsel %vm345, %v288, %v462
        %v615 = vsel %vm345, %v289, %v464
        %v616 = vsel %vm345, %v290, %v466
        %v617 = vsel %vm345, %v291, %v468
        %v618 = vsel %vm345, %v292, %v470
        %v619 = vsel %vm345, %v293, %v472
        %v620 = vsel %vm345, 0.0, %v474
        %v621 = vpack.c.bf16 %v614, %v613
        %v622 = vpack.c.bf16 %v616, %v615
        %v623 = vpack.c.bf16 %v618, %v617
        %v624 = vpack.c.bf16 %v620, %v619
        %v625 = vld [vmem:[%s3] sm:$0xf]
        %v626 = vld [vmem:[%s3 + $0x4] sm:$0xf]
        %v627 = vld [vmem:[%s3 + $0x8] sm:$0xf]
        %v628 = vld [vmem:[%s3 + $0xc] sm:$0xf]
        %v633 = vunpack.c.l.b16 %v625
        %v634 = vunpack.c.l.b16 %v626
        %v635 = vunpack.c.l.b16 %v627
        %v636 = vunpack.c.l.b16 %v628
        %v637 = vpack.c.b16 %v634, %v633
        %v638 = vpack.c.b16 %v636, %v635
        %v642 = vsel %vm511, %v621, 0
        %v645 = vsel %vm511, %v622, 0
        %v648 = vsel %vm511, %v623, 0
        %v651 = vsel %vm511, %v624, 0
        %653 = vmatprep.subr.bf16.mxu0 0
        %654 = vmatpush1.bf16.msra.mxu0 %v637
        %655 = vmatprep.subr.bf16.mxu0 0
        %656 = vmatpush1.bf16.msra.mxu0 %v638
        %657 = vmatprep.subr.bf16.mxu0 0
        %658 = vmatpush1.bf16.msra.mxu0 0
        %659 = vmatprep.subr.bf16.mxu0 0
        %660 = vmatpush1.bf16.msra.mxu0 0
        %661 = vmatprep.subr.bf16.mxu0 0
        %662 = vmatpush1.bf16.msra.mxu0 0
        %663 = vmatprep.subr.bf16.mxu0 0
        %664 = vmatpush1.bf16.msra.mxu0 0
        %665 = vmatprep.subr.bf16.mxu0 0
        %666 = vmatpush1.bf16.msra.mxu0 0
        %667 = vmatprep.subr.bf16.mxu0 0
        %668 = vmatpush1.bf16.msra.mxu0 0
        %669 = vmatprep.subr.bf16.mxu0 0
        %670 = vmatpush1.bf16.msra.mxu0 0
        %671 = vmatprep.subr.bf16.mxu0 0
        %672 = vmatpush1.bf16.msra.mxu0 0
        %673 = vmatprep.subr.bf16.mxu0 0
        %674 = vmatpush1.bf16.msra.mxu0 0
        %675 = vmatprep.subr.bf16.mxu0 0
        %676 = vmatpush1.bf16.msra.mxu0 0
        %677 = vmatprep.subr.bf16.mxu0 0
        %678 = vmatpush1.bf16.msra.mxu0 0
        %679 = vmatprep.subr.bf16.mxu0 0
        %680 = vmatpush1.bf16.msra.mxu0 0
        %681 = vmatprep.subr.bf16.mxu0 0
        %682 = vmatpush1.bf16.msra.mxu0 0
        %683 = vmatprep.subr.bf16.mxu0 0
        %684 = vmatpush1.bf16.msra.mxu0 0
        %685 = vmatprep.mubr.bf16.mxu0 0
        %686 = vmatmul.mubr.bf16.gmra.mrb[0].mxu0 %v642
        %v687 = vpop.f32.mrb[0].mxu0
        %v688 = vadd.f32 0.0, %v687
        %v689 = vpop.f32.mrb[0].mxu0
        %v690 = vpop.f32.mrb[0].mxu0
        %v691 = vadd.f32 0.0, %v690
        %v692 = vpop.f32.mrb[0].mxu0
        %693 = vmatprep.mubr.bf16.mxu0 0
        %694 = vmatmul.mubr.bf16.gmra.mrb[0].mxu0 %v645
        %v695 = vpop.f32.mrb[0].mxu0
        %v696 = vadd.f32 0.0, %v695
        %v697 = vpop.f32.mrb[0].mxu0
        %v698 = vpop.f32.mrb[0].mxu0
        %v699 = vadd.f32 0.0, %v698
        %v700 = vpop.f32.mrb[0].mxu0
        %701 = vmatprep.mubr.bf16.mxu0 0
        %702 = vmatmul.mubr.bf16.gmra.mrb[0].mxu0 %v648
        %v703 = vpop.f32.mrb[0].mxu0
        %v704 = vadd.f32 0.0, %v703
        %v705 = vpop.f32.mrb[0].mxu0
        %v706 = vpop.f32.mrb[0].mxu0
        %v707 = vadd.f32 0.0, %v706
        %v708 = vpop.f32.mrb[0].mxu0
        %709 = vmatprep.mubr.bf16.mxu0 0
        %710 = vmatmul.mubr.bf16.gmra.mrb[0].mxu0 %v651
        %v711 = vpop.f32.mrb[0].mxu0
        %v712 = vadd.f32 0.0, %v711
        %v713 = vpop.f32.mrb[0].mxu0
        %v714 = vpop.f32.mrb[0].mxu0
        %v715 = vadd.f32 0.0, %v714
        %v716 = vpop.f32.mrb[0].mxu0
        %717 = vdwg.mxu0
        %v718 = vmul.f32 %v688, %v427
        %v719 = vmul.f32 %v691, %v427
        %v720 = vmul.f32 %v696, %v427
        %v721 = vmul.f32 %v699, %v427
        %v722 = vmul.f32 %v704, %v427
        %v723 = vmul.f32 %v707, %v427
        %v724 = vmul.f32 %v712, %v427
        %v725 = vmul.f32 %v715, %v427
        %v726 = vadd.f32 %v718, %v441
        %v727 = vadd.f32 %v719, %v441
        %v728 = vadd.f32 %v720, %v441
        %v729 = vadd.f32 %v721, %v441
        %v730 = vadd.f32 %v722, %v441
        %v731 = vadd.f32 %v723, %v441
        %v732 = vadd.f32 %v724, %v441
        %v733 = vadd.f32 %v725, %v441
        %v734 = vmax.f32 %v726, 0.0
        %v735 = vmax.f32 %v727, 0.0
        %v736 = vmax.f32 %v728, 0.0
        %v737 = vmax.f32 %v729, 0.0
        %v738 = vmax.f32 %v730, 0.0
        %v739 = vmax.f32 %v731, 0.0
        %v740 = vmax.f32 %v732, 0.0
        %v741 = vmax.f32 %v733, 0.0
        %742 = vrot.lane.b32.xlu0 0.0, 16
        %v743 = vpop.permute.xlu0 %742
        %745 = vrot.lane.b32.xlu0 %v306, 32
        %v746 = vpop.permute.xlu0 %745
        %747 = vrot.lane.b32.xlu0 %v308, 32
        %v748 = vpop.permute.xlu0 %747
        %749 = vrot.lane.b32.xlu0 %v310, 32
        %v750 = vpop.permute.xlu0 %749
        %751 = vrot.lane.b32.xlu0 %v312, 32
        %v752 = vpop.permute.xlu0 %751
        %753 = vrot.lane.b32.xlu0 %v314, 32
        %v754 = vpop.permute.xlu0 %753
        %755 = vrot.lane.b32.xlu0 %v316, 32
        %v756 = vpop.permute.xlu0 %755
        %757 = vrot.lane.b32.xlu0 %v318, 32
        %v758 = vpop.permute.xlu0 %757
        %759 = vrot.lane.b32.xlu0 %v320, 32
        %v760 = vpop.permute.xlu0 %759
        %769 = vrot.lane.b32.xlu0 %v286, 48
        %v770 = vpop.permute.xlu0 %769
        %771 = vrot.lane.b32.xlu0 %v287, 48
        %v772 = vpop.permute.xlu0 %771
        %773 = vrot.lane.b32.xlu0 %v288, 48
        %v774 = vpop.permute.xlu0 %773
        %775 = vrot.lane.b32.xlu0 %v289, 48
        %v776 = vpop.permute.xlu0 %775
        %777 = vrot.lane.b32.xlu0 %v290, 48
        %v778 = vpop.permute.xlu0 %777
        %779 = vrot.lane.b32.xlu0 %v291, 48
        %v780 = vpop.permute.xlu0 %779
        %781 = vrot.lane.b32.xlu0 %v292, 48
        %v782 = vpop.permute.xlu0 %781
        %783 = vrot.lane.b32.xlu0 %v293, 48
        %v784 = vpop.permute.xlu0 %783
        %v793 = vsel %vm345, %v329, %v743
        %v794 = vsel %vm511, %v484, %v746
        %v795 = vsel %vm511, %v485, %v748
        %v796 = vsel %vm511, %v486, %v750
        %v797 = vsel %vm511, %v487, %v752
        %v798 = vsel %vm511, %v488, %v754
        %v799 = vsel %vm511, %v489, %v756
        %v800 = vsel %vm511, %v490, %v758
        %v801 = vsel %vm511, %v793, %v760
        %vm802 = vcmask 392192
        %v803 = vsel %vm802, %v794, %v770
        %v804 = vsel %vm802, %v795, %v772
        %v805 = vsel %vm802, %v796, %v774
        %v806 = vsel %vm802, %v797, %v776
        %v807 = vsel %vm802, %v798, %v778
        %v808 = vsel %vm802, %v799, %v780
        %v809 = vsel %vm802, %v800, %v782
        %v810 = vsel %vm802, %v801, %v784
        %v811 = vpack.c.bf16 %v804, %v803
        %v812 = vpack.c.bf16 %v806, %v805
        %v813 = vpack.c.bf16 %v808, %v807
        %v814 = vpack.c.bf16 %v810, %v809
        %v815 = vld [vmem:[%s4] sm:$0xf]
        %v816 = vld [vmem:[%s4 + $0x4] sm:$0xf]
        %v817 = vld [vmem:[%s4 + $0x8] sm:$0xf]
        %v818 = vld [vmem:[%s4 + $0xc] sm:$0xf]
        %v819 = vld [vmem:[%s4 + $0x10] sm:$0xf]
        %v820 = vld [vmem:[%s4 + $0x14] sm:$0xf]
        %v821 = vld [vmem:[%s4 + $0x18] sm:$0xf]
        %v822 = vld [vmem:[%s4 + $0x1c] sm:$0xf]
        %v831 = vunpack.c.l.b16 %v815
        %v832 = vunpack.c.l.b16 %v816
        %v833 = vunpack.c.l.b16 %v817
        %v834 = vunpack.c.l.b16 %v818
        %v835 = vunpack.c.l.b16 %v819
        %v836 = vunpack.c.l.b16 %v820
        %v837 = vunpack.c.l.b16 %v821
        %v838 = vunpack.c.l.b16 %v822
        %v839 = vpack.c.b16 %v832, %v831
        %v840 = vpack.c.b16 %v834, %v833
        %v841 = vpack.c.b16 %v836, %v835
        %v842 = vpack.c.b16 %v838, %v837
        %vm847 = vcmask 523264
        %v849 = vsel %vm847, %v811, 0
        %v852 = vsel %vm847, %v812, 0
        %v855 = vsel %vm847, %v813, 0
        %v858 = vsel %vm847, %v814, 0
        %860 = vmatprep.subr.bf16.mxu0 0
        %861 = vmatpush1.bf16.msra.mxu0 %v839
        %862 = vmatprep.subr.bf16.mxu0 0
        %863 = vmatpush1.bf16.msra.mxu0 %v840
        %864 = vmatprep.subr.bf16.mxu0 0
        %865 = vmatpush1.bf16.msra.mxu0 %v841
        %866 = vmatprep.subr.bf16.mxu0 0
        %867 = vmatpush1.bf16.msra.mxu0 %v842
        %868 = vmatprep.subr.bf16.mxu0 0
        %869 = vmatpush1.bf16.msra.mxu0 0
        %870 = vmatprep.subr.bf16.mxu0 0
        %871 = vmatpush1.bf16.msra.mxu0 0
        %872 = vmatprep.subr.bf16.mxu0 0
        %873 = vmatpush1.bf16.msra.mxu0 0
        %874 = vmatprep.subr.bf16.mxu0 0
        %875 = vmatpush1.bf16.msra.mxu0 0
        %876 = vmatprep.subr.bf16.mxu0 0
        %877 = vmatpush1.bf16.msra.mxu0 0
        %878 = vmatprep.subr.bf16.mxu0 0
        %879 = vmatpush1.bf16.msra.mxu0 0
        %880 = vmatprep.subr.bf16.mxu0 0
        %881 = vmatpush1.bf16.msra.mxu0 0
        %882 = vmatprep.subr.bf16.mxu0 0
        %883 = vmatpush1.bf16.msra.mxu0 0
        %884 = vmatprep.subr.bf16.mxu0 0
        %885 = vmatpush1.bf16.msra.mxu0 0
        %886 = vmatprep.subr.bf16.mxu0 0
        %887 = vmatpush1.bf16.msra.mxu0 0
        %888 = vmatprep.subr.bf16.mxu0 0
        %889 = vmatpush1.bf16.msra.mxu0 0
        %890 = vmatprep.subr.bf16.mxu0 0
        %891 = vmatpush1.bf16.msra.mxu0 0
        %892 = vmatprep.mubr.bf16.mxu0 0
        %893 = vmatmul.mubr.bf16.gmra.mrb[0].mxu0 %v849
        %v894 = vpop.f32.mrb[0].mxu0
        %v895 = vadd.f32 0.0, %v894
        %v896 = vpop.f32.mrb[0].mxu0
        %v897 = vpop.f32.mrb[0].mxu0
        %v898 = vadd.f32 0.0, %v897
        %v899 = vpop.f32.mrb[0].mxu0
        %900 = vmatprep.mubr.bf16.mxu0 0
        %901 = vmatmul.mubr.bf16.gmra.mrb[0].mxu0 %v852
        %v902 = vpop.f32.mrb[0].mxu0
        %v903 = vadd.f32 0.0, %v902
        %v904 = vpop.f32.mrb[0].mxu0
        %v905 = vpop.f32.mrb[0].mxu0
        %v906 = vadd.f32 0.0, %v905
        %v907 = vpop.f32.mrb[0].mxu0
        %908 = vmatprep.mubr.bf16.mxu0 0
        %909 = vmatmul.mubr.bf16.gmra.mrb[0].mxu0 %v855
        %v910 = vpop.f32.mrb[0].mxu0
        %v911 = vadd.f32 0.0, %v910
        %v912 = vpop.f32.mrb[0].mxu0
        %v913 = vpop.f32.mrb[0].mxu0
        %v914 = vadd.f32 0.0, %v913
        %v915 = vpop.f32.mrb[0].mxu0
        %916 = vmatprep.mubr.bf16.mxu0 0
        %917 = vmatmul.mubr.bf16.gmra.mrb[0].mxu0 %v858
        %v918 = vpop.f32.mrb[0].mxu0
        %v919 = vadd.f32 0.0, %v918
        %v920 = vpop.f32.mrb[0].mxu0
        %v921 = vpop.f32.mrb[0].mxu0
        %v922 = vadd.f32 0.0, %v921
        %v923 = vpop.f32.mrb[0].mxu0
        %924 = vdwg.mxu0
        %v925 = vmul.f32 %v895, %v427
        %v926 = vmul.f32 %v898, %v427
        %v927 = vmul.f32 %v903, %v427
        %v928 = vmul.f32 %v906, %v427
        %v929 = vmul.f32 %v911, %v427
        %v930 = vmul.f32 %v914, %v427
        %v931 = vmul.f32 %v919, %v427
        %v932 = vmul.f32 %v922, %v427
        %v933 = vadd.f32 %v925, %v441
        %v934 = vadd.f32 %v926, %v441
        %v935 = vadd.f32 %v927, %v441
        %v936 = vadd.f32 %v928, %v441
        %v937 = vadd.f32 %v929, %v441
        %v938 = vadd.f32 %v930, %v441
        %v939 = vadd.f32 %v931, %v441
        %v940 = vadd.f32 %v932, %v441
        %v941 = vmax.f32 %v933, 0.0
        %v942 = vmax.f32 %v934, 0.0
        %v943 = vmax.f32 %v935, 0.0
        %v944 = vmax.f32 %v936, 0.0
        %v945 = vmax.f32 %v937, 0.0
        %v946 = vmax.f32 %v938, 0.0
        %v947 = vmax.f32 %v939, 0.0
        %v948 = vmax.f32 %v940, 0.0
        %957 = vrot.lane.b32.xlu0 %v605, 8
        %v958 = vpop.permute.xlu0 %957
        %959 = vrot.lane.b32.xlu0 %v606, 8
        %v960 = vpop.permute.xlu0 %959
        %961 = vrot.lane.b32.xlu0 %v607, 8
        %v962 = vpop.permute.xlu0 %961
        %963 = vrot.lane.b32.xlu0 %v608, 8
        %v964 = vpop.permute.xlu0 %963
        %965 = vrot.lane.b32.xlu0 %v609, 8
        %v966 = vpop.permute.xlu0 %965
        %967 = vrot.lane.b32.xlu0 %v610, 8
        %v968 = vpop.permute.xlu0 %967
        %969 = vrot.lane.b32.xlu0 %v611, 8
        %v970 = vpop.permute.xlu0 %969
        %971 = vrot.lane.b32.xlu0 %v612, 8
        %v972 = vpop.permute.xlu0 %971
        %989 = vrot.lane.b32.xlu0 %v734, 16
        %v990 = vpop.permute.xlu0 %989
        %991 = vrot.lane.b32.xlu0 %v735, 16
        %v992 = vpop.permute.xlu0 %991
        %993 = vrot.lane.b32.xlu0 %v736, 16
        %v994 = vpop.permute.xlu0 %993
        %995 = vrot.lane.b32.xlu0 %v737, 16
        %v996 = vpop.permute.xlu0 %995
        %997 = vrot.lane.b32.xlu0 %v738, 16
        %v998 = vpop.permute.xlu0 %997
        %999 = vrot.lane.b32.xlu0 %v739, 16
        %v1000 = vpop.permute.xlu0 %999
        %1001 = vrot.lane.b32.xlu0 %v740, 16
        %v1002 = vpop.permute.xlu0 %1001
        %1003 = vrot.lane.b32.xlu0 %v741, 16
        %v1004 = vpop.permute.xlu0 %1003
        %1021 = vrot.lane.b32.xlu0 %v941, 24
        %v1022 = vpop.permute.xlu0 %1021
        %1023 = vrot.lane.b32.xlu0 %v942, 24
        %v1024 = vpop.permute.xlu0 %1023
        %1025 = vrot.lane.b32.xlu0 %v943, 24
        %v1026 = vpop.permute.xlu0 %1025
        %1027 = vrot.lane.b32.xlu0 %v944, 24
        %v1028 = vpop.permute.xlu0 %1027
        %1029 = vrot.lane.b32.xlu0 %v945, 24
        %v1030 = vpop.permute.xlu0 %1029
        %1031 = vrot.lane.b32.xlu0 %v946, 24
        %v1032 = vpop.permute.xlu0 %1031
        %1033 = vrot.lane.b32.xlu0 %v947, 24
        %v1034 = vpop.permute.xlu0 %1033
        %1035 = vrot.lane.b32.xlu0 %v948, 24
        %v1036 = vpop.permute.xlu0 %1035
        %vm1045 = vcmask 64512
        %v1046 = vsel %vm1045, %v451, %v958
        %v1047 = vsel %vm1045, %v452, %v960
        %v1048 = vsel %vm1045, %v453, %v962
        %v1049 = vsel %vm1045, %v454, %v964
        %v1050 = vsel %vm1045, %v455, %v966
        %v1051 = vsel %vm1045, %v456, %v968
        %v1052 = vsel %vm1045, %v457, %v970
        %v1053 = vsel %vm1045, %v458, %v972
        %v1054 = vsel %vm345, %v1046, %v990
        %v1055 = vsel %vm345, %v1047, %v992
        %v1056 = vsel %vm345, %v1048, %v994
        %v1057 = vsel %vm345, %v1049, %v996
        %v1058 = vsel %vm345, %v1050, %v998
        %v1059 = vsel %vm345, %v1051, %v1000
        %v1060 = vsel %vm345, %v1052, %v1002
        %v1061 = vsel %vm345, %v1053, %v1004
        %vm1062 = vcmask 195584
        %v1063 = vsel %vm1062, %v1054, %v1022
        %v1064 = vsel %vm1062, %v1055, %v1024
        %v1065 = vsel %vm1062, %v1056, %v1026
        %v1066 = vsel %vm1062, %v1057, %v1028
        %v1067 = vsel %vm1062, %v1058, %v1030
        %v1068 = vsel %vm1062, %v1059, %v1032
        %v1069 = vsel %vm1062, %v1060, %v1034
        %v1070 = vsel %vm1062, %v1061, %v1036
        %v1071 = vpack.c.bf16 %v1063, %v1063
        %v1072 = vpack.c.bf16 %v1064, %v1064
        %v1073 = vpack.c.bf16 %v1065, %v1065
        %v1074 = vpack.c.bf16 %v1066, %v1066
        %v1075 = vpack.c.bf16 %v1067, %v1067
        %v1076 = vpack.c.bf16 %v1068, %v1068
        %v1077 = vpack.c.bf16 %v1069, %v1069
        %v1078 = vpack.c.bf16 %v1070, %v1070
        %vm1079 = vcmask 257024
        %1080 = vst.msk [vmem:[%s271] sm:$0xf] %vm1079, %v1071
        %1081 = vst.msk [vmem:[%s271 + $0x4] sm:$0xf] %vm1079, %v1072
        %1082 = vst.msk [vmem:[%s271 + $0x8] sm:$0xf] %vm1079, %v1073
        %1083 = vst.msk [vmem:[%s271 + $0xc] sm:$0xf] %vm1079, %v1074
        %1084 = vst.msk [vmem:[%s271 + $0x10] sm:$0xf] %vm1079, %v1075
        %1085 = vst.msk [vmem:[%s271 + $0x14] sm:$0xf] %vm1079, %v1076
        %1086 = vst.msk [vmem:[%s271 + $0x18] sm:$0xf] %vm1079, %v1077
        %1087 = vst.msk [vmem:[%s271 + $0x1c] sm:$0xf] %vm1079, %v1078
        %s1088 = sand.u32 %s181, 1
        %s1089 = scalar_lea.sflag [#allocation3], %s1088
        %s1090 = sand.u32 %s181, 1
        %s1091 = smul.addr %s1090, 32
        %s1092 = scalar_lea.vmem [#allocation2], %s1091
        // Predicated region
        $region49: #{tpu_custom_call.1} parent=47 // pred_check
          %p1093 = pneg %p191
        $region50: #{tpu_custom_call.1} parent=47 // pred_check_branch
          %1095 = sbr.rel (%p1093) target = $region52
        $region51: #{tpu_custom_call.1} parent=47 // pred_region
          %s1097 = ssub.s32 512, 512
          %1098 = vsyncadd %s1089, %s1097
          %s1099 = smul.addr %s21, 8
          %s1100 = smul.addr %s1099, 64
          %s1101 = scalar_lea.hbm %s7, %s1100
          %s1102 = sshll.u32 %s1092, 4
          %s1103 = int_to_ptr.vmem [resolvable:$true] %s1102
          %1108 = dma.vmem_to_hbm [thread:$0]  %s1103, 512, %s1101, %s1089, 64, 64, 4
        $region52: #{tpu_custom_call.1} parent=47 // pred_fallthru
          _
      $region48: #{tpu_custom_call.1} parent=5 // pred_fallthru
        _
      %p1109 = scmp.le.s32.totalorder 2, %s16
      // Predicated region
      $region53: #{tpu_custom_call.1} parent=5 // pred_check
        %p1110 = pneg %p1109
      $region54: #{tpu_custom_call.1} parent=5 // pred_check_branch
        %1112 = sbr.rel (%p1110) target = $region56
      $region55: #{tpu_custom_call.1} parent=5 // pred_region
        %s1113 = ssub.s32 %s16, 2
        // Predicated region
        $region57: #{tpu_custom_call.1} parent=55 // pred_check
          %p1114 = pneg %p197
        $region58: #{tpu_custom_call.1} parent=55 // pred_check_branch
          %1116 = sbr.rel (%p1114) target = $region60
        $region59: #{tpu_custom_call.1} parent=55 // pred_region
          %s1117 = sand.u32 %s182, 1
          %s1118 = scalar_lea.sflag [#allocation3], %s1117
          %s1119 = sand.u32 %s182, 1
          %s1120 = smul.addr %s1119, 32
          %s1121 = scalar_lea.vmem [#allocation2], %s1120
          %1122 = dma.done %s1118, 512
        $region60: #{tpu_custom_call.1} parent=55 // pred_fallthru
          _
      $region56: #{tpu_custom_call.1} parent=5 // pred_fallthru
        _
    $region6: #{tpu_custom_call.1} parent=1 // loop_footer
      %s20 = sadd.s32 1, %s16
    $region7: #{tpu_custom_call.1} parent=1 // loop_footer_branch
      %15 = sbr.rel target = $region3
    $region8: #{tpu_custom_call.1} parent=1 // loop_exit
      _
    %1123 = vsyncpa [#allocation3], 1
    %s1124 = scalar_lea.sflag [#allocation3], 1
    %1125 = vsyncpa %s1124, 1

</llo_original>
